<compile_context>
chip_gen: v5e
topology: v5e:2x2
jax: 0.10.0
libtpu: 0.0.40
codegen_flags: <defaults>
</compile_context>

<pallas_src>
import jax
import jax.numpy as jnp
from jax.experimental import pallas as pl
from jax.experimental.pallas import tpu as pltpu


def _round_up(x, m):
    return (x + m - 1) // m * m


def mlp_edge_kernel(hs_ref, hd_ref, w1s_ref, w1d_ref, b1_ref, w2_ref, b2_ref,
                    out_ref):
    # cat([h_src, h_dst], -1) @ W1  ==  h_src @ W1[:F] + h_dst @ W1[F:]
    h1 = (jnp.dot(hs_ref[...], w1s_ref[...], preferred_element_type=jnp.float32)
          + jnp.dot(hd_ref[...], w1d_ref[...], preferred_element_type=jnp.float32)
          + b1_ref[...])                                           # (TE, Hp)
    h1 = jnp.maximum(h1, 0.0)                                      # ReLU
    score = (jnp.dot(h1, w2_ref[...], preferred_element_type=jnp.float32)
             + b2_ref[...])                                        # (TE, 1)
    out_ref[...] = score.astype(out_ref.dtype)


def mlp_predictor_forward(h, src, dst, params, *, tile_e=256):
    """h: (N, h_feats) node embeddings; src/dst: (E,) int32 edge endpoints."""
    w1, b1, w2, b2 = params          # (2F, F), (F,), (F, 1), (1,)
    F = h.shape[1]
    H = w1.shape[1]
    E = src.shape[0]

    # Gather edge endpoint features in the wrapper (plain XLA gather).
    hs = jnp.take(h, src, axis=0).astype(jnp.float32)              # (E, F)
    hd = jnp.take(h, dst, axis=0).astype(jnp.float32)              # (E, F)

    # Pad the edge dim to a tile multiple and the hidden dim to 128 lanes.
    E_pad = _round_up(max(E, tile_e), tile_e)
    H_pad = _round_up(H, 128)

    hs = jnp.pad(hs, ((0, E_pad - E), (0, 0)))
    hd = jnp.pad(hd, ((0, E_pad - E), (0, 0)))
    w1f = w1.astype(jnp.float32)
    w1s = jnp.pad(w1f[:F], ((0, 0), (0, H_pad - H)))               # (F, Hp)
    w1d = jnp.pad(w1f[F:], ((0, 0), (0, H_pad - H)))               # (F, Hp)
    b1p = jnp.pad(b1.astype(jnp.float32).reshape(1, H),
                  ((0, 0), (0, H_pad - H)))                        # (1, Hp)
    w2p = jnp.pad(w2.astype(jnp.float32), ((0, H_pad - H), (0, 0)))  # (Hp, 1)
    b2p = b2.astype(jnp.float32).reshape(1, 1)                     # (1, 1)

    grid = (E_pad // tile_e,)
    edge_map = lambda i: (i, 0)
    const_map = lambda i: (0, 0)

    cost = pl.CostEstimate(
        flops=4 * E_pad * F * H_pad + 2 * E_pad * H_pad,
        transcendentals=0,
        bytes_accessed=4 * (2 * E_pad * F            # hs + hd
                            + 2 * F * H_pad + 2 * H_pad + 1   # weights/biases
                            + E_pad),                # scores
    )

    out = pl.pallas_call(
        mlp_edge_kernel,
        out_shape=jax.ShapeDtypeStruct((E_pad, 1), jnp.float32),
        grid=grid,
        in_specs=[
            pl.BlockSpec((tile_e, F), edge_map),     # h_src tile
            pl.BlockSpec((tile_e, F), edge_map),     # h_dst tile
            pl.BlockSpec((F, H_pad), const_map),     # W1[:F]   (VMEM-resident)
            pl.BlockSpec((F, H_pad), const_map),     # W1[F:]   (VMEM-resident)
            pl.BlockSpec((1, H_pad), const_map),     # b1       (VMEM-resident)
            pl.BlockSpec((H_pad, 1), const_map),     # W2       (VMEM-resident)
            pl.BlockSpec((1, 1), const_map),         # b2       (VMEM-resident)
        ],
        out_specs=pl.BlockSpec((tile_e, 1), edge_map),
        compiler_params=pltpu.CompilerParams(
            dimension_semantics=("parallel",),
            vmem_limit_bytes=32 * 1024 * 1024,
        ),
        cost_estimate=cost,
    )(hs, hd, w1s, w1d, b1p, w2p, b2p)

    return out[:E, 0]


def init_params(key, h_feats):
    # nn.Linear default init: U(-1/sqrt(fan_in), 1/sqrt(fan_in)); stored (in, out).
    k1, k2, k3, k4 = jax.random.split(key, 4)
    s1 = 1.0 / jnp.sqrt(2.0 * h_feats)
    s2 = 1.0 / jnp.sqrt(float(h_feats))
    w1 = jax.random.uniform(k1, (2 * h_feats, h_feats), jnp.float32, -s1, s1)
    b1 = jax.random.uniform(k2, (h_feats,), jnp.float32, -s1, s1)
    w2 = jax.random.uniform(k3, (h_feats, 1), jnp.float32, -s2, s2)
    b2 = jax.random.uniform(k4, (1,), jnp.float32, -s2, s2)
    return (w1, b1, w2, b2)


def reference_forward(h, src, dst, params):
    # Pure-JAX reference (mirrors MLPPredictor.apply_edges).
    w1, b1, w2, b2 = params
    x = jnp.concatenate([h[src], h[dst]], axis=1)
    h1 = jnp.maximum(x @ w1 + b1, 0.0)
    return (h1 @ w2 + b2)[:, 0]


if __name__ == "__main__":
    key = jax.random.PRNGKey(0)
    k_graph, k_feat, k_param = jax.random.split(key, 3)

    # Small synthetic graph: N nodes, h_feats-dim node embeddings.
    N, h_feats = 16, 32

    # Deterministic random directed edge set (~25% density, no self loops).
    probs = jax.random.uniform(k_graph, (N, N))
    mask = (probs < 0.25) & (~jnp.eye(N, dtype=bool))
    rows, cols = jnp.nonzero(mask)          # edges rows -> cols
    src = cols.astype(jnp.int32)
    dst = rows.astype(jnp.int32)

    h = jax.random.normal(k_feat, (N, h_feats), jnp.float32)
    params = init_params(k_param, h_feats)

    scores = mlp_predictor_forward(h, src, dst, params, tile_e=256)
    scores = jax.block_until_ready(scores)

    ref = reference_forward(h, src, dst, params)
    assert scores.shape == ref.shape == (src.shape[0],)
    assert jnp.allclose(scores, ref, atol=1e-4, rtol=1e-4), "mismatch vs JAX reference"

    print("KERNEL_OK")
</pallas_src>

<mosaic_0001>
module attributes {stable_mosaic.version = 11 : i64} {
  func.func @mlp_edge_kernel(%arg0: i32, %arg1: memref<256x32xf32, #tpu.memory_space<vmem>>, %arg2: memref<256x32xf32, #tpu.memory_space<vmem>>, %arg3: memref<32x128xf32, #tpu.memory_space<vmem>>, %arg4: memref<32x128xf32, #tpu.memory_space<vmem>>, %arg5: memref<1x128xf32, #tpu.memory_space<vmem>>, %arg6: memref<128x1xf32, #tpu.memory_space<vmem>>, %arg7: memref<1x1xf32, #tpu.memory_space<vmem>>, %arg8: memref<256x1xf32, #tpu.memory_space<vmem>>) attributes {dimension_semantics = [#tpu.dimension_semantics<parallel>], iteration_bounds = array<i64: 1>, scalar_prefetch = 0 : i64, scratch_operands = 0 : i64, tpu.core_type = #tpu.core_type<tc>, window_params = [{transform_indices = @transform_0, window_bounds = array<i64: 256, 32>}, {transform_indices = @transform_1, window_bounds = array<i64: 256, 32>}, {pipeline_mode = #tpu.pipeline_mode<synchronous>, transform_indices = @transform_2, window_bounds = array<i64: 32, 128>}, {pipeline_mode = #tpu.pipeline_mode<synchronous>, transform_indices = @transform_3, window_bounds = array<i64: 32, 128>}, {pipeline_mode = #tpu.pipeline_mode<synchronous>, transform_indices = @transform_4, window_bounds = array<i64: 1, 128>}, {pipeline_mode = #tpu.pipeline_mode<synchronous>, transform_indices = @transform_5, window_bounds = array<i64: 128, 1>}, {pipeline_mode = #tpu.pipeline_mode<synchronous>, transform_indices = @transform_6, window_bounds = array<i64: 1, 1>}, {transform_indices = @transform_7, window_bounds = array<i64: 256, 1>}]} {
    %c0 = arith.constant 0 : index
    %c0_0 = arith.constant 0 : index
    %0 = vector.load %arg1[%c0, %c0_0] : memref<256x32xf32, #tpu.memory_space<vmem>>, vector<256x32xf32>
    %c0_1 = arith.constant 0 : index
    %c0_2 = arith.constant 0 : index
    %1 = vector.load %arg3[%c0_1, %c0_2] : memref<32x128xf32, #tpu.memory_space<vmem>>, vector<32x128xf32>
    %cst = arith.constant dense<0.000000e+00> : vector<256x128xf32>
    %2 = tpu.matmul %0, %1, %cst {dimension_numbers = #tpu.dot_dimension_numbers<[1], [0], [0], [1], [0, 0, 1, 1], [], []>} : vector<256x32xf32>, vector<32x128xf32>, vector<256x128xf32> -> vector<256x128xf32>
    %c0_3 = arith.constant 0 : index
    %c0_4 = arith.constant 0 : index
    %3 = vector.load %arg2[%c0_3, %c0_4] : memref<256x32xf32, #tpu.memory_space<vmem>>, vector<256x32xf32>
    %c0_5 = arith.constant 0 : index
    %c0_6 = arith.constant 0 : index
    %4 = vector.load %arg4[%c0_5, %c0_6] : memref<32x128xf32, #tpu.memory_space<vmem>>, vector<32x128xf32>
    %cst_7 = arith.constant dense<0.000000e+00> : vector<256x128xf32>
    %5 = tpu.matmul %3, %4, %cst_7 {dimension_numbers = #tpu.dot_dimension_numbers<[1], [0], [0], [1], [0, 0, 1, 1], [], []>} : vector<256x32xf32>, vector<32x128xf32>, vector<256x128xf32> -> vector<256x128xf32>
    %6 = arith.addf %2, %5 : vector<256x128xf32>
    %c0_8 = arith.constant 0 : index
    %c0_9 = arith.constant 0 : index
    %7 = vector.load %arg5[%c0_8, %c0_9] : memref<1x128xf32, #tpu.memory_space<vmem>>, vector<1x128xf32>
    %8 = vector.broadcast %7 : vector<1x128xf32> to vector<256x128xf32>
    %9 = arith.addf %6, %8 : vector<256x128xf32>
    %cst_10 = arith.constant 0.000000e+00 : f32
    %10 = vector.broadcast %cst_10 : f32 to vector<256x128xf32>
    %11 = arith.maximumf %9, %10 : vector<256x128xf32>
    %c0_11 = arith.constant 0 : index
    %c0_12 = arith.constant 0 : index
    %12 = vector.load %arg6[%c0_11, %c0_12] : memref<128x1xf32, #tpu.memory_space<vmem>>, vector<128x1xf32>
    %cst_13 = arith.constant dense<0.000000e+00> : vector<256x1xf32>
    %13 = tpu.matmul %11, %12, %cst_13 {dimension_numbers = #tpu.dot_dimension_numbers<[1], [0], [0], [1], [0, 0, 1, 1], [], []>} : vector<256x128xf32>, vector<128x1xf32>, vector<256x1xf32> -> vector<256x1xf32>
    %c0_14 = arith.constant 0 : index
    %c0_15 = arith.constant 0 : index
    %14 = vector.load %arg7[%c0_14, %c0_15] : memref<1x1xf32, #tpu.memory_space<vmem>>, vector<1x1xf32>
    %15 = vector.broadcast %14 : vector<1x1xf32> to vector<256x1xf32>
    %16 = arith.addf %13, %15 : vector<256x1xf32>
    %c0_16 = arith.constant 0 : index
    %c0_17 = arith.constant 0 : index
    %17 = vector.load %arg8[%c0_16, %c0_17] : memref<256x1xf32, #tpu.memory_space<vmem>>, vector<256x1xf32>
    tpu.vector_store %arg8[%c0_16, %c0_17], %16 {strides = array<i32>} : memref<256x1xf32, #tpu.memory_space<vmem>>, vector<256x1xf32>,
    return
  }
  func.func @transform_0(%arg0: i32) -> (i32, i32) {
    %c0_i32 = arith.constant 0 : i32
    %c0_i32_0 = arith.constant 0 : i32
    return %arg0, %c0_i32 : i32, i32
  }
  func.func @transform_1(%arg0: i32) -> (i32, i32) {
    %c0_i32 = arith.constant 0 : i32
    %c0_i32_0 = arith.constant 0 : i32
    return %arg0, %c0_i32 : i32, i32
  }
  func.func @transform_2(%arg0: i32) -> (i32, i32) {
    %c0_i32 = arith.constant 0 : i32
    %c0_i32_0 = arith.constant 0 : i32
    %c0_i32_1 = arith.constant 0 : i32
    return %c0_i32, %c0_i32_0 : i32, i32
  }
  func.func @transform_3(%arg0: i32) -> (i32, i32) {
    %c0_i32 = arith.constant 0 : i32
    %c0_i32_0 = arith.constant 0 : i32
    %c0_i32_1 = arith.constant 0 : i32
    return %c0_i32, %c0_i32_0 : i32, i32
  }
  func.func @transform_4(%arg0: i32) -> (i32, i32) {
    %c0_i32 = arith.constant 0 : i32
    %c0_i32_0 = arith.constant 0 : i32
    %c0_i32_1 = arith.constant 0 : i32
    return %c0_i32, %c0_i32_0 : i32, i32
  }
  func.func @transform_5(%arg0: i32) -> (i32, i32) {
    %c0_i32 = arith.constant 0 : i32
    %c0_i32_0 = arith.constant 0 : i32
    %c0_i32_1 = arith.constant 0 : i32
    return %c0_i32, %c0_i32_0 : i32, i32
  }
  func.func @transform_6(%arg0: i32) -> (i32, i32) {
    %c0_i32 = arith.constant 0 : i32
    %c0_i32_0 = arith.constant 0 : i32
    %c0_i32_1 = arith.constant 0 : i32
    return %c0_i32, %c0_i32_0 : i32, i32
  }
  func.func @transform_7(%arg0: i32) -> (i32, i32) {
    %c0_i32 = arith.constant 0 : i32
    %c0_i32_0 = arith.constant 0 : i32
    return %arg0, %c0_i32 : i32, i32
  }
}

</mosaic_0001>

<llo_original>
// kernel: tpu_custom_call.1
$region0: #{tpu_custom_call.1}
  #allocation0 [shape = 'u32[]', space=smem, size = 0x4, offset = 0x4, fixed_abs, tag = 'smem constant byte address 0x4 - core index']
  #allocation1 [shape = 'u32[72,128]{1,0:T(1,128)}', space=vmem, size = 0x9000, scoped, tag = 'internal scratch']
  #allocation2 [shape = 'f32[1,1]{1,0:T(1,128)S(1)}', space=vmem, size = 0x200, scoped, tag = 'scoped memory for tpu_custom_call.1']
  %s0 = inlined_call_operand.vmem [shape: f32[256,32], index: 0, kind: input, shape index: {}]
  %s1 = inlined_call_operand.vmem [shape: f32[256,32], index: 1, kind: input, shape index: {}]
  %s2 = inlined_call_operand.vmem [shape: f32[32,128], index: 2, kind: input, shape index: {}]
  %s3 = inlined_call_operand.vmem [shape: f32[32,128], index: 3, kind: input, shape index: {}]
  %s4 = inlined_call_operand.vmem [shape: f32[1,128], index: 4, kind: input, shape index: {}]
  %s5 = inlined_call_operand.vmem [shape: f32[128,1], index: 5, kind: input, shape index: {}]
  %s6 = inlined_call_operand.<no memory space> [shape: f32[1,1], index: 6, kind: input, shape index: {}]
  %s7 = inlined_call_operand.vmem [shape: f32[256,1], index: 7, kind: output, shape index: {}]
  %s8 = sld [smem:[#allocation0]]
  $region38: #{tpu_custom_call.1} parent=0
    _
  %s10 = ssub.s32 1, %s8
  %s11 = scalar_select 0, %s10, %s8
  %v12 = vstv %s6
  %13 = vst [vmem:[#allocation2] sm:$0x1] %v12
  // Predicated region
  $region2: #{tpu_custom_call.1} parent=0 // pred_check
    _
  $region3: #{tpu_custom_call.1} parent=0 // pred_check_branch
    %15 = sbr.rel (0) target = $region5
  $region4: #{tpu_custom_call.1} parent=0 // pred_region
    _
  $region5: #{tpu_custom_call.1} parent=0 // pred_fallthru
    _
  // Predicated region
  $region6: #{tpu_custom_call.1} parent=0 // pred_check
    _
  $region7: #{tpu_custom_call.1} parent=0 // pred_check_branch
    %17 = sbr.rel (0) target = $region9
  $region8: #{tpu_custom_call.1} parent=0 // pred_region
    _
  $region9: #{tpu_custom_call.1} parent=0 // pred_fallthru
    _
  // Predicated region
  $region10: #{tpu_custom_call.1} parent=0 // pred_check
    _
  $region11: #{tpu_custom_call.1} parent=0 // pred_check_branch
    %19 = sbr.rel (0) target = $region13
  $region12: #{tpu_custom_call.1} parent=0 // pred_region
    _
  $region13: #{tpu_custom_call.1} parent=0 // pred_fallthru
    _
  // Predicated region
  $region14: #{tpu_custom_call.1} parent=0 // pred_check
    _
  $region15: #{tpu_custom_call.1} parent=0 // pred_check_branch
    %21 = sbr.rel (0) target = $region17
  $region16: #{tpu_custom_call.1} parent=0 // pred_region
    _
  $region17: #{tpu_custom_call.1} parent=0 // pred_fallthru
    _
  // Predicated region
  $region18: #{tpu_custom_call.1} parent=0 // pred_check
    _
  $region19: #{tpu_custom_call.1} parent=0 // pred_check_branch
    %23 = sbr.rel (0) target = $region21
  $region20: #{tpu_custom_call.1} parent=0 // pred_region
    _
  $region21: #{tpu_custom_call.1} parent=0 // pred_fallthru
    _
  // Predicated region
  $region22: #{tpu_custom_call.1} parent=0 // pred_check
    _
  $region23: #{tpu_custom_call.1} parent=0 // pred_check_branch
    %25 = sbr.rel (0) target = $region25
  $region24: #{tpu_custom_call.1} parent=0 // pred_region
    _
  $region25: #{tpu_custom_call.1} parent=0 // pred_fallthru
    _
  // Predicated region
  $region26: #{tpu_custom_call.1} parent=0 // pred_check
    _
  $region27: #{tpu_custom_call.1} parent=0 // pred_check_branch
    %27 = sbr.rel (0) target = $region29
  $region28: #{tpu_custom_call.1} parent=0 // pred_region
    _
  $region29: #{tpu_custom_call.1} parent=0 // pred_fallthru
    _
  %v28 = vld [vmem:[%s0] sm:$0xff]
  %v29 = vld [vmem:[%s0 + $0x8] sm:$0xff]
  %v30 = vld [vmem:[%s0 + $0x10] sm:$0xff]
  %v31 = vld [vmem:[%s0 + $0x18] sm:$0xff]
  %v32 = vld [vmem:[%s0 + $0x20] sm:$0xff]
  %v33 = vld [vmem:[%s0 + $0x28] sm:$0xff]
  %v34 = vld [vmem:[%s0 + $0x30] sm:$0xff]
  %v35 = vld [vmem:[%s0 + $0x38] sm:$0xff]
  %v36 = vld [vmem:[%s0 + $0x40] sm:$0xff]
  %v37 = vld [vmem:[%s0 + $0x48] sm:$0xff]
  %v38 = vld [vmem:[%s0 + $0x50] sm:$0xff]
  %v39 = vld [vmem:[%s0 + $0x58] sm:$0xff]
  %v40 = vld [vmem:[%s0 + $0x60] sm:$0xff]
  %v41 = vld [vmem:[%s0 + $0x68] sm:$0xff]
  %v42 = vld [vmem:[%s0 + $0x70] sm:$0xff]
  %v43 = vld [vmem:[%s0 + $0x78] sm:$0xff]
  %v44 = vld [vmem:[%s0 + $0x80] sm:$0xff]
  %v45 = vld [vmem:[%s0 + $0x88] sm:$0xff]
  %v46 = vld [vmem:[%s0 + $0x90] sm:$0xff]
  %v47 = vld [vmem:[%s0 + $0x98] sm:$0xff]
  %v48 = vld [vmem:[%s0 + $0xa0] sm:$0xff]
  %v49 = vld [vmem:[%s0 + $0xa8] sm:$0xff]
  %v50 = vld [vmem:[%s0 + $0xb0] sm:$0xff]
  %v51 = vld [vmem:[%s0 + $0xb8] sm:$0xff]
  %v52 = vld [vmem:[%s0 + $0xc0] sm:$0xff]
  %v53 = vld [vmem:[%s0 + $0xc8] sm:$0xff]
  %v54 = vld [vmem:[%s0 + $0xd0] sm:$0xff]
  %v55 = vld [vmem:[%s0 + $0xd8] sm:$0xff]
  %v56 = vld [vmem:[%s0 + $0xe0] sm:$0xff]
  %v57 = vld [vmem:[%s0 + $0xe8] sm:$0xff]
  %v58 = vld [vmem:[%s0 + $0xf0] sm:$0xff]
  %v59 = vld [vmem:[%s0 + $0xf8] sm:$0xff]
  %v60 = vld [vmem:[%s2] sm:$0xff]
  %v61 = vld [vmem:[%s2 + $0x8] sm:$0xff]
  %v62 = vld [vmem:[%s2 + $0x10] sm:$0xff]
  %v63 = vld [vmem:[%s2 + $0x18] sm:$0xff]
  %v64 = vld [vmem:[%s1] sm:$0xff]
  %v65 = vld [vmem:[%s1 + $0x8] sm:$0xff]
  %v66 = vld [vmem:[%s1 + $0x10] sm:$0xff]
  %v67 = vld [vmem:[%s1 + $0x18] sm:$0xff]
  %v68 = vld [vmem:[%s1 + $0x20] sm:$0xff]
  %v69 = vld [vmem:[%s1 + $0x28] sm:$0xff]
  %v70 = vld [vmem:[%s1 + $0x30] sm:$0xff]
  %v71 = vld [vmem:[%s1 + $0x38] sm:$0xff]
  %v72 = vld [vmem:[%s1 + $0x40] sm:$0xff]
  %v73 = vld [vmem:[%s1 + $0x48] sm:$0xff]
  %v74 = vld [vmem:[%s1 + $0x50] sm:$0xff]
  %v75 = vld [vmem:[%s1 + $0x58] sm:$0xff]
  %v76 = vld [vmem:[%s1 + $0x60] sm:$0xff]
  %v77 = vld [vmem:[%s1 + $0x68] sm:$0xff]
  %v78 = vld [vmem:[%s1 + $0x70] sm:$0xff]
  %v79 = vld [vmem:[%s1 + $0x78] sm:$0xff]
  %v80 = vld [vmem:[%s1 + $0x80] sm:$0xff]
  %v81 = vld [vmem:[%s1 + $0x88] sm:$0xff]
  %v82 = vld [vmem:[%s1 + $0x90] sm:$0xff]
  %v83 = vld [vmem:[%s1 + $0x98] sm:$0xff]
  %v84 = vld [vmem:[%s1 + $0xa0] sm:$0xff]
  %v85 = vld [vmem:[%s1 + $0xa8] sm:$0xff]
  %v86 = vld [vmem:[%s1 + $0xb0] sm:$0xff]
  %v87 = vld [vmem:[%s1 + $0xb8] sm:$0xff]
  %v88 = vld [vmem:[%s1 + $0xc0] sm:$0xff]
  %v89 = vld [vmem:[%s1 + $0xc8] sm:$0xff]
  %v90 = vld [vmem:[%s1 + $0xd0] sm:$0xff]
  %v91 = vld [vmem:[%s1 + $0xd8] sm:$0xff]
  %v92 = vld [vmem:[%s1 + $0xe0] sm:$0xff]
  %v93 = vld [vmem:[%s1 + $0xe8] sm:$0xff]
  %v94 = vld [vmem:[%s1 + $0xf0] sm:$0xff]
  %v95 = vld [vmem:[%s1 + $0xf8] sm:$0xff]
  %v96 = vld [vmem:[%s3] sm:$0xff]
  %v97 = vld [vmem:[%s3 + $0x8] sm:$0xff]
  %v98 = vld [vmem:[%s3 + $0x10] sm:$0xff]
  %v99 = vld [vmem:[%s3 + $0x18] sm:$0xff]
  %vm100 = vcmask 261120
  %v102 = vsel %vm100, %v64, 0
  %v105 = vsel %vm100, %v65, 0
  %v108 = vsel %vm100, %v66, 0
  %v111 = vsel %vm100, %v67, 0
  %v114 = vsel %vm100, %v68, 0
  %v117 = vsel %vm100, %v69, 0
  %v120 = vsel %vm100, %v70, 0
  %v123 = vsel %vm100, %v71, 0
  %v126 = vsel %vm100, %v72, 0
  %v129 = vsel %vm100, %v73, 0
  %v132 = vsel %vm100, %v74, 0
  %v135 = vsel %vm100, %v75, 0
  %v138 = vsel %vm100, %v76, 0
  %v141 = vsel %vm100, %v77, 0
  %v144 = vsel %vm100, %v78, 0
  %v147 = vsel %vm100, %v79, 0
  %v150 = vsel %vm100, %v80, 0
  %v153 = vsel %vm100, %v81, 0
  %v156 = vsel %vm100, %v82, 0
  %v159 = vsel %vm100, %v83, 0
  %v162 = vsel %vm100, %v84, 0
  %v165 = vsel %vm100, %v85, 0
  %v168 = vsel %vm100, %v86, 0
  %v171 = vsel %vm100, %v87, 0
  %v174 = vsel %vm100, %v88, 0
  %v177 = vsel %vm100, %v89, 0
  %v180 = vsel %vm100, %v90, 0
  %v183 = vsel %vm100, %v91, 0
  %v186 = vsel %vm100, %v92, 0
  %v189 = vsel %vm100, %v93, 0
  %v192 = vsel %vm100, %v94, 0
  %v195 = vsel %vm100, %v95, 0
  %197 = vmatpush.msra.mxu0 0.0
  %198 = vmatpush.msra.mxu0 0.0
  %199 = vmatpush.msra.mxu0 0.0
  %200 = vmatpush.msra.mxu0 0.0
  %201 = vmatpush.msra.mxu0 0.0
  %202 = vmatpush.msra.mxu0 0.0
  %203 = vmatpush.msra.mxu0 0.0
  %204 = vmatpush.msra.mxu0 0.0
  %205 = vmatpush.msra.mxu0 0.0
  %206 = vmatpush.msra.mxu0 0.0
  %207 = vmatpush.msra.mxu0 0.0
  %208 = vmatpush.msra.mxu0 0.0
  %209 = vmatpush.msra.mxu0 %v99
  %210 = vmatpush.msra.mxu0 %v98
  %211 = vmatpush.msra.mxu0 %v97
  %212 = vmatpush.msra.mxu0 %v96
  %213 = vmatmul.f32.gmra.mxu0 %v102
  %v214 = vpop.f32.mrf.mxu0
  %v215 = vadd.f32 0.0, %v214
  %216 = vmatmul.f32.gmra.mxu0 %v105
  %v217 = vpop.f32.mrf.mxu0
  %v218 = vadd.f32 0.0, %v217
  %219 = vmatmul.f32.gmra.mxu0 %v108
  %v220 = vpop.f32.mrf.mxu0
  %v221 = vadd.f32 0.0, %v220
  %222 = vmatmul.f32.gmra.mxu0 %v111
  %v223 = vpop.f32.mrf.mxu0
  %v224 = vadd.f32 0.0, %v223
  %225 = vmatmul.f32.gmra.mxu0 %v114
  %v226 = vpop.f32.mrf.mxu0
  %v227 = vadd.f32 0.0, %v226
  %228 = vmatmul.f32.gmra.mxu0 %v117
  %v229 = vpop.f32.mrf.mxu0
  %v230 = vadd.f32 0.0, %v229
  %231 = vmatmul.f32.gmra.mxu0 %v120
  %v232 = vpop.f32.mrf.mxu0
  %v233 = vadd.f32 0.0, %v232
  %234 = vmatmul.f32.gmra.mxu0 %v123
  %v235 = vpop.f32.mrf.mxu0
  %v236 = vadd.f32 0.0, %v235
  %237 = vmatmul.f32.gmra.mxu0 %v126
  %v238 = vpop.f32.mrf.mxu0
  %v239 = vadd.f32 0.0, %v238
  %240 = vmatmul.f32.gmra.mxu0 %v129
  %v241 = vpop.f32.mrf.mxu0
  %v242 = vadd.f32 0.0, %v241
  %243 = vmatmul.f32.gmra.mxu0 %v132
  %v244 = vpop.f32.mrf.mxu0
  %v245 = vadd.f32 0.0, %v244
  %246 = vmatmul.f32.gmra.mxu0 %v135
  %v247 = vpop.f32.mrf.mxu0
  %v248 = vadd.f32 0.0, %v247
  %249 = vmatmul.f32.gmra.mxu0 %v138
  %v250 = vpop.f32.mrf.mxu0
  %v251 = vadd.f32 0.0, %v250
  %252 = vmatmul.f32.gmra.mxu0 %v141
  %v253 = vpop.f32.mrf.mxu0
  %v254 = vadd.f32 0.0, %v253
  %255 = vmatmul.f32.gmra.mxu0 %v144
  %v256 = vpop.f32.mrf.mxu0
  %v257 = vadd.f32 0.0, %v256
  %258 = vmatmul.f32.gmra.mxu0 %v147
  %v259 = vpop.f32.mrf.mxu0
  %v260 = vadd.f32 0.0, %v259
  %261 = vmatmul.f32.gmra.mxu0 %v150
  %v262 = vpop.f32.mrf.mxu0
  %v263 = vadd.f32 0.0, %v262
  %264 = vmatmul.f32.gmra.mxu0 %v153
  %v265 = vpop.f32.mrf.mxu0
  %v266 = vadd.f32 0.0, %v265
  %267 = vmatmul.f32.gmra.mxu0 %v156
  %v268 = vpop.f32.mrf.mxu0
  %v269 = vadd.f32 0.0, %v268
  %270 = vmatmul.f32.gmra.mxu0 %v159
  %v271 = vpop.f32.mrf.mxu0
  %v272 = vadd.f32 0.0, %v271
  %273 = vmatmul.f32.gmra.mxu0 %v162
  %v274 = vpop.f32.mrf.mxu0
  %v275 = vadd.f32 0.0, %v274
  %276 = vmatmul.f32.gmra.mxu0 %v165
  %v277 = vpop.f32.mrf.mxu0
  %v278 = vadd.f32 0.0, %v277
  %279 = vmatmul.f32.gmra.mxu0 %v168
  %v280 = vpop.f32.mrf.mxu0
  %v281 = vadd.f32 0.0, %v280
  %282 = vmatmul.f32.gmra.mxu0 %v171
  %v283 = vpop.f32.mrf.mxu0
  %v284 = vadd.f32 0.0, %v283
  %285 = vmatmul.f32.gmra.mxu0 %v174
  %v286 = vpop.f32.mrf.mxu0
  %v287 = vadd.f32 0.0, %v286
  %288 = vmatmul.f32.gmra.mxu0 %v177
  %v289 = vpop.f32.mrf.mxu0
  %v290 = vadd.f32 0.0, %v289
  %291 = vmatmul.f32.gmra.mxu0 %v180
  %v292 = vpop.f32.mrf.mxu0
  %v293 = vadd.f32 0.0, %v292
  %294 = vmatmul.f32.gmra.mxu0 %v183
  %v295 = vpop.f32.mrf.mxu0
  %v296 = vadd.f32 0.0, %v295
  %297 = vmatmul.f32.gmra.mxu0 %v186
  %v298 = vpop.f32.mrf.mxu0
  %v299 = vadd.f32 0.0, %v298
  %300 = vmatmul.f32.gmra.mxu0 %v189
  %v301 = vpop.f32.mrf.mxu0
  %v302 = vadd.f32 0.0, %v301
  %303 = vmatmul.f32.gmra.mxu0 %v192
  %v304 = vpop.f32.mrf.mxu0
  %v305 = vadd.f32 0.0, %v304
  %306 = vmatmul.f32.gmra.mxu0 %v195
  %v307 = vpop.f32.mrf.mxu0
  %v308 = vadd.f32 0.0, %v307
  %309 = vdwg.mxu0
  %v311 = vsel %vm100, %v28, 0
  %v314 = vsel %vm100, %v29, 0
  %v317 = vsel %vm100, %v30, 0
  %v320 = vsel %vm100, %v31, 0
  %v323 = vsel %vm100, %v32, 0
  %v326 = vsel %vm100, %v33, 0
  %v329 = vsel %vm100, %v34, 0
  %v332 = vsel %vm100, %v35, 0
  %v335 = vsel %vm100, %v36, 0
  %v338 = vsel %vm100, %v37, 0
  %v341 = vsel %vm100, %v38, 0
  %v344 = vsel %vm100, %v39, 0
  %v347 = vsel %vm100, %v40, 0
  %v350 = vsel %vm100, %v41, 0
  %v353 = vsel %vm100, %v42, 0
  %v356 = vsel %vm100, %v43, 0
  %v359 = vsel %vm100, %v44, 0
  %v362 = vsel %vm100, %v45, 0
  %v365 = vsel %vm100, %v46, 0
  %v368 = vsel %vm100, %v47, 0
  %v371 = vsel %vm100, %v48, 0
  %v374 = vsel %vm100, %v49, 0
  %v377 = vsel %vm100, %v50, 0
  %v380 = vsel %vm100, %v51, 0
  %v383 = vsel %vm100, %v52, 0
  %v386 = vsel %vm100, %v53, 0
  %v389 = vsel %vm100, %v54, 0
  %v392 = vsel %vm100, %v55, 0
  %v395 = vsel %vm100, %v56, 0
  %v398 = vsel %vm100, %v57, 0
  %v401 = vsel %vm100, %v58, 0
  %v404 = vsel %vm100, %v59, 0
  %406 = vmatpush.msra.mxu0 0.0
  %407 = vmatpush.msra.mxu0 0.0
  %408 = vmatpush.msra.mxu0 0.0
  %409 = vmatpush.msra.mxu0 0.0
  %410 = vmatpush.msra.mxu0 0.0
  %411 = vmatpush.msra.mxu0 0.0
  %412 = vmatpush.msra.mxu0 0.0
  %413 = vmatpush.msra.mxu0 0.0
  %414 = vmatpush.msra.mxu0 0.0
  %415 = vmatpush.msra.mxu0 0.0
  %416 = vmatpush.msra.mxu0 0.0
  %417 = vmatpush.msra.mxu0 0.0
  %418 = vmatpush.msra.mxu0 %v63
  %419 = vmatpush.msra.mxu0 %v62
  %420 = vmatpush.msra.mxu0 %v61
  %421 = vmatpush.msra.mxu0 %v60
  %422 = vmatmul.f32.gmra.mxu0 %v311
  %v423 = vpop.f32.mrf.mxu0
  %v424 = vadd.f32 %v215, %v423
  %425 = vmatmul.f32.gmra.mxu0 %v314
  %v426 = vpop.f32.mrf.mxu0
  %v427 = vadd.f32 %v218, %v426
  %428 = vmatmul.f32.gmra.mxu0 %v317
  %v429 = vpop.f32.mrf.mxu0
  %v430 = vadd.f32 %v221, %v429
  %431 = vmatmul.f32.gmra.mxu0 %v320
  %v432 = vpop.f32.mrf.mxu0
  %v433 = vadd.f32 %v224, %v432
  %434 = vmatmul.f32.gmra.mxu0 %v323
  %v435 = vpop.f32.mrf.mxu0
  %v436 = vadd.f32 %v227, %v435
  %437 = vmatmul.f32.gmra.mxu0 %v326
  %v438 = vpop.f32.mrf.mxu0
  %v439 = vadd.f32 %v230, %v438
  %440 = vmatmul.f32.gmra.mxu0 %v329
  %v441 = vpop.f32.mrf.mxu0
  %v442 = vadd.f32 %v233, %v441
  %443 = vmatmul.f32.gmra.mxu0 %v332
  %v444 = vpop.f32.mrf.mxu0
  %v445 = vadd.f32 %v236, %v444
  %446 = vmatmul.f32.gmra.mxu0 %v335
  %v447 = vpop.f32.mrf.mxu0
  %v448 = vadd.f32 %v239, %v447
  %449 = vmatmul.f32.gmra.mxu0 %v338
  %v450 = vpop.f32.mrf.mxu0
  %v451 = vadd.f32 %v242, %v450
  %452 = vmatmul.f32.gmra.mxu0 %v341
  %v453 = vpop.f32.mrf.mxu0
  %v454 = vadd.f32 %v245, %v453
  %455 = vmatmul.f32.gmra.mxu0 %v344
  %v456 = vpop.f32.mrf.mxu0
  %v457 = vadd.f32 %v248, %v456
  %458 = vmatmul.f32.gmra.mxu0 %v347
  %v459 = vpop.f32.mrf.mxu0
  %v460 = vadd.f32 %v251, %v459
  %461 = vmatmul.f32.gmra.mxu0 %v350
  %v462 = vpop.f32.mrf.mxu0
  %v463 = vadd.f32 %v254, %v462
  %464 = vmatmul.f32.gmra.mxu0 %v353
  %v465 = vpop.f32.mrf.mxu0
  %v466 = vadd.f32 %v257, %v465
  %467 = vmatmul.f32.gmra.mxu0 %v356
  %v468 = vpop.f32.mrf.mxu0
  %v469 = vadd.f32 %v260, %v468
  %470 = vmatmul.f32.gmra.mxu0 %v359
  %v471 = vpop.f32.mrf.mxu0
  %v472 = vadd.f32 %v263, %v471
  %473 = vmatmul.f32.gmra.mxu0 %v362
  %v474 = vpop.f32.mrf.mxu0
  %v475 = vadd.f32 %v266, %v474
  %476 = vmatmul.f32.gmra.mxu0 %v365
  %v477 = vpop.f32.mrf.mxu0
  %v478 = vadd.f32 %v269, %v477
  %479 = vmatmul.f32.gmra.mxu0 %v368
  %v480 = vpop.f32.mrf.mxu0
  %v481 = vadd.f32 %v272, %v480
  %482 = vmatmul.f32.gmra.mxu0 %v371
  %v483 = vpop.f32.mrf.mxu0
  %v484 = vadd.f32 %v275, %v483
  %485 = vmatmul.f32.gmra.mxu0 %v374
  %v486 = vpop.f32.mrf.mxu0
  %v487 = vadd.f32 %v278, %v486
  %488 = vmatmul.f32.gmra.mxu0 %v377
  %v489 = vpop.f32.mrf.mxu0
  %v490 = vadd.f32 %v281, %v489
  %491 = vmatmul.f32.gmra.mxu0 %v380
  %v492 = vpop.f32.mrf.mxu0
  %v493 = vadd.f32 %v284, %v492
  %494 = vmatmul.f32.gmra.mxu0 %v383
  %v495 = vpop.f32.mrf.mxu0
  %v496 = vadd.f32 %v287, %v495
  %497 = vmatmul.f32.gmra.mxu0 %v386
  %v498 = vpop.f32.mrf.mxu0
  %v499 = vadd.f32 %v290, %v498
  %500 = vmatmul.f32.gmra.mxu0 %v389
  %v501 = vpop.f32.mrf.mxu0
  %v502 = vadd.f32 %v293, %v501
  %503 = vmatmul.f32.gmra.mxu0 %v392
  %v504 = vpop.f32.mrf.mxu0
  %v505 = vadd.f32 %v296, %v504
  %506 = vmatmul.f32.gmra.mxu0 %v395
  %v507 = vpop.f32.mrf.mxu0
  %v508 = vadd.f32 %v299, %v507
  %509 = vmatmul.f32.gmra.mxu0 %v398
  %v510 = vpop.f32.mrf.mxu0
  %v511 = vadd.f32 %v302, %v510
  %512 = vmatmul.f32.gmra.mxu0 %v401
  %v513 = vpop.f32.mrf.mxu0
  %v514 = vadd.f32 %v305, %v513
  %515 = vmatmul.f32.gmra.mxu0 %v404
  %v516 = vpop.f32.mrf.mxu0
  %v517 = vadd.f32 %v308, %v516
  %518 = vdwg.mxu0
  %v519 = vld [vmem:[%s4] sm:$0x1]
  %v521 = vperm.slane %v519, 0
  %v523 = vadd.f32 %v424, %v521
  %v524 = vadd.f32 %v427, %v521
  %v525 = vadd.f32 %v430, %v521
  %v526 = vadd.f32 %v433, %v521
  %v527 = vadd.f32 %v436, %v521
  %v528 = vadd.f32 %v439, %v521
  %v529 = vadd.f32 %v442, %v521
  %v530 = vadd.f32 %v445, %v521
  %v531 = vadd.f32 %v448, %v521
  %v532 = vadd.f32 %v451, %v521
  %v533 = vadd.f32 %v454, %v521
  %v534 = vadd.f32 %v457, %v521
  %v535 = vadd.f32 %v460, %v521
  %v536 = vadd.f32 %v463, %v521
  %v537 = vadd.f32 %v466, %v521
  %v538 = vadd.f32 %v469, %v521
  %v539 = vadd.f32 %v472, %v521
  %v540 = vadd.f32 %v475, %v521
  %v541 = vadd.f32 %v478, %v521
  %v542 = vadd.f32 %v481, %v521
  %v543 = vadd.f32 %v484, %v521
  %v544 = vadd.f32 %v487, %v521
  %v545 = vadd.f32 %v490, %v521
  %v546 = vadd.f32 %v493, %v521
  %v547 = vadd.f32 %v496, %v521
  %v548 = vadd.f32 %v499, %v521
  %v549 = vadd.f32 %v502, %v521
  %v550 = vadd.f32 %v505, %v521
  %v551 = vadd.f32 %v508, %v521
  %v552 = vadd.f32 %v511, %v521
  %v553 = vadd.f32 %v514, %v521
  %v554 = vadd.f32 %v517, %v521
  %v555 = vmax.f32 %v523, 0.0
  %v556 = vmax.f32 %v524, 0.0
  %v557 = vmax.f32 %v525, 0.0
  %v558 = vmax.f32 %v526, 0.0
  %v559 = vmax.f32 %v527, 0.0
  %v560 = vmax.f32 %v528, 0.0
  %v561 = vmax.f32 %v529, 0.0
  %v562 = vmax.f32 %v530, 0.0
  %v563 = vmax.f32 %v531, 0.0
  %v564 = vmax.f32 %v532, 0.0
  %v565 = vmax.f32 %v533, 0.0
  %v566 = vmax.f32 %v534, 0.0
  %v567 = vmax.f32 %v535, 0.0
  %v568 = vmax.f32 %v536, 0.0
  %v569 = vmax.f32 %v537, 0.0
  %v570 = vmax.f32 %v538, 0.0
  %v571 = vmax.f32 %v539, 0.0
  %v572 = vmax.f32 %v540, 0.0
  %v573 = vmax.f32 %v541, 0.0
  %v574 = vmax.f32 %v542, 0.0
  %v575 = vmax.f32 %v543, 0.0
  %v576 = vmax.f32 %v544, 0.0
  %v577 = vmax.f32 %v545, 0.0
  %v578 = vmax.f32 %v546, 0.0
  %v579 = vmax.f32 %v547, 0.0
  %v580 = vmax.f32 %v548, 0.0
  %v581 = vmax.f32 %v549, 0.0
  %v582 = vmax.f32 %v550, 0.0
  %v583 = vmax.f32 %v551, 0.0
  %v584 = vmax.f32 %v552, 0.0
  %v585 = vmax.f32 %v553, 0.0
  %v586 = vmax.f32 %v554, 0.0
  %v587 = vld [vmem:[%s5] sm:$0xff]
  %v588 = vld [vmem:[%s5 + $0x8] sm:$0xff]
  %v589 = vld [vmem:[%s5 + $0x10] sm:$0xff]
  %v590 = vld [vmem:[%s5 + $0x18] sm:$0xff]
  %v591 = vld [vmem:[%s5 + $0x20] sm:$0xff]
  %v592 = vld [vmem:[%s5 + $0x28] sm:$0xff]
  %v593 = vld [vmem:[%s5 + $0x30] sm:$0xff]
  %v594 = vld [vmem:[%s5 + $0x38] sm:$0xff]
  %v595 = vld [vmem:[%s5 + $0x40] sm:$0xff]
  %v596 = vld [vmem:[%s5 + $0x48] sm:$0xff]
  %v597 = vld [vmem:[%s5 + $0x50] sm:$0xff]
  %v598 = vld [vmem:[%s5 + $0x58] sm:$0xff]
  %v599 = vld [vmem:[%s5 + $0x60] sm:$0xff]
  %v600 = vld [vmem:[%s5 + $0x68] sm:$0xff]
  %v601 = vld [vmem:[%s5 + $0x70] sm:$0xff]
  %v602 = vld [vmem:[%s5 + $0x78] sm:$0xff]
  %v603 = vld [vmem:[#allocation2] sm:$0x1]
  %v605 = vperm.slane %v603, 0
  %607 = vmatpush.msra.mxu0 %v602
  %608 = vmatpush.msra.mxu0 %v601
  %609 = vmatpush.msra.mxu0 %v600
  %610 = vmatpush.msra.mxu0 %v599
  %611 = vmatpush.msra.mxu0 %v598
  %612 = vmatpush.msra.mxu0 %v597
  %613 = vmatpush.msra.mxu0 %v596
  %614 = vmatpush.msra.mxu0 %v595
  %615 = vmatpush.msra.mxu0 %v594
  %616 = vmatpush.msra.mxu0 %v593
  %617 = vmatpush.msra.mxu0 %v592
  %618 = vmatpush.msra.mxu0 %v591
  %619 = vmatpush.msra.mxu0 %v590
  %620 = vmatpush.msra.mxu0 %v589
  %621 = vmatpush.msra.mxu0 %v588
  %622 = vmatpush.msra.mxu0 %v587
  %623 = vmatmul.f32.gmra.mxu0 %v555
  %v624 = vpop.f32.mrf.mxu0
  %v625 = vadd.f32 %v605, %v624
  %626 = vmatmul.f32.gmra.mxu0 %v556
  %v627 = vpop.f32.mrf.mxu0
  %v628 = vadd.f32 %v605, %v627
  %629 = vmatmul.f32.gmra.mxu0 %v557
  %v630 = vpop.f32.mrf.mxu0
  %v631 = vadd.f32 %v605, %v630
  %632 = vmatmul.f32.gmra.mxu0 %v558
  %v633 = vpop.f32.mrf.mxu0
  %v634 = vadd.f32 %v605, %v633
  %635 = vmatmul.f32.gmra.mxu0 %v559
  %v636 = vpop.f32.mrf.mxu0
  %v637 = vadd.f32 %v605, %v636
  %638 = vmatmul.f32.gmra.mxu0 %v560
  %v639 = vpop.f32.mrf.mxu0
  %v640 = vadd.f32 %v605, %v639
  %641 = vmatmul.f32.gmra.mxu0 %v561
  %v642 = vpop.f32.mrf.mxu0
  %v643 = vadd.f32 %v605, %v642
  %644 = vmatmul.f32.gmra.mxu0 %v562
  %v645 = vpop.f32.mrf.mxu0
  %v646 = vadd.f32 %v605, %v645
  %647 = vmatmul.f32.gmra.mxu0 %v563
  %v648 = vpop.f32.mrf.mxu0
  %v649 = vadd.f32 %v605, %v648
  %650 = vmatmul.f32.gmra.mxu0 %v564
  %v651 = vpop.f32.mrf.mxu0
  %v652 = vadd.f32 %v605, %v651
  %653 = vmatmul.f32.gmra.mxu0 %v565
  %v654 = vpop.f32.mrf.mxu0
  %v655 = vadd.f32 %v605, %v654
  %656 = vmatmul.f32.gmra.mxu0 %v566
  %v657 = vpop.f32.mrf.mxu0
  %v658 = vadd.f32 %v605, %v657
  %659 = vmatmul.f32.gmra.mxu0 %v567
  %v660 = vpop.f32.mrf.mxu0
  %v661 = vadd.f32 %v605, %v660
  %662 = vmatmul.f32.gmra.mxu0 %v568
  %v663 = vpop.f32.mrf.mxu0
  %v664 = vadd.f32 %v605, %v663
  %665 = vmatmul.f32.gmra.mxu0 %v569
  %v666 = vpop.f32.mrf.mxu0
  %v667 = vadd.f32 %v605, %v666
  %668 = vmatmul.f32.gmra.mxu0 %v570
  %v669 = vpop.f32.mrf.mxu0
  %v670 = vadd.f32 %v605, %v669
  %671 = vmatmul.f32.gmra.mxu0 %v571
  %v672 = vpop.f32.mrf.mxu0
  %v673 = vadd.f32 %v605, %v672
  %674 = vmatmul.f32.gmra.mxu0 %v572
  %v675 = vpop.f32.mrf.mxu0
  %v676 = vadd.f32 %v605, %v675
  %677 = vmatmul.f32.gmra.mxu0 %v573
  %v678 = vpop.f32.mrf.mxu0
  %v679 = vadd.f32 %v605, %v678
  %680 = vmatmul.f32.gmra.mxu0 %v574
  %v681 = vpop.f32.mrf.mxu0
  %v682 = vadd.f32 %v605, %v681
  %683 = vmatmul.f32.gmra.mxu0 %v575
  %v684 = vpop.f32.mrf.mxu0
  %v685 = vadd.f32 %v605, %v684
  %686 = vmatmul.f32.gmra.mxu0 %v576
  %v687 = vpop.f32.mrf.mxu0
  %v688 = vadd.f32 %v605, %v687
  %689 = vmatmul.f32.gmra.mxu0 %v577
  %v690 = vpop.f32.mrf.mxu0
  %v691 = vadd.f32 %v605, %v690
  %692 = vmatmul.f32.gmra.mxu0 %v578
  %v693 = vpop.f32.mrf.mxu0
  %v694 = vadd.f32 %v605, %v693
  %695 = vmatmul.f32.gmra.mxu0 %v579
  %v696 = vpop.f32.mrf.mxu0
  %v697 = vadd.f32 %v605, %v696
  %698 = vmatmul.f32.gmra.mxu0 %v580
  %v699 = vpop.f32.mrf.mxu0
  %v700 = vadd.f32 %v605, %v699
  %701 = vmatmul.f32.gmra.mxu0 %v581
  %v702 = vpop.f32.mrf.mxu0
  %v703 = vadd.f32 %v605, %v702
  %704 = vmatmul.f32.gmra.mxu0 %v582
  %v705 = vpop.f32.mrf.mxu0
  %v706 = vadd.f32 %v605, %v705
  %707 = vmatmul.f32.gmra.mxu0 %v583
  %v708 = vpop.f32.mrf.mxu0
  %v709 = vadd.f32 %v605, %v708
  %710 = vmatmul.f32.gmra.mxu0 %v584
  %v711 = vpop.f32.mrf.mxu0
  %v712 = vadd.f32 %v605, %v711
  %713 = vmatmul.f32.gmra.mxu0 %v585
  %v714 = vpop.f32.mrf.mxu0
  %v715 = vadd.f32 %v605, %v714
  %716 = vmatmul.f32.gmra.mxu0 %v586
  %v717 = vpop.f32.mrf.mxu0
  %v718 = vadd.f32 %v605, %v717
  %719 = vdwg.mxu0
  %vm720 = vcmask 7168
  %721 = vst.msk [vmem:[%s7] sm:$0xff] %vm720, %v625
  %722 = vst.msk [vmem:[%s7 + $0x8] sm:$0xff] %vm720, %v628
  %723 = vst.msk [vmem:[%s7 + $0x10] sm:$0xff] %vm720, %v631
  %724 = vst.msk [vmem:[%s7 + $0x18] sm:$0xff] %vm720, %v634
  %725 = vst.msk [vmem:[%s7 + $0x20] sm:$0xff] %vm720, %v637
  %726 = vst.msk [vmem:[%s7 + $0x28] sm:$0xff] %vm720, %v640
  %727 = vst.msk [vmem:[%s7 + $0x30] sm:$0xff] %vm720, %v643
  %728 = vst.msk [vmem:[%s7 + $0x38] sm:$0xff] %vm720, %v646
  %729 = vst.msk [vmem:[%s7 + $0x40] sm:$0xff] %vm720, %v649
  %730 = vst.msk [vmem:[%s7 + $0x48] sm:$0xff] %vm720, %v652
  %731 = vst.msk [vmem:[%s7 + $0x50] sm:$0xff] %vm720, %v655
  %732 = vst.msk [vmem:[%s7 + $0x58] sm:$0xff] %vm720, %v658
  %733 = vst.msk [vmem:[%s7 + $0x60] sm:$0xff] %vm720, %v661
  %734 = vst.msk [vmem:[%s7 + $0x68] sm:$0xff] %vm720, %v664
  %735 = vst.msk [vmem:[%s7 + $0x70] sm:$0xff] %vm720, %v667
  %736 = vst.msk [vmem:[%s7 + $0x78] sm:$0xff] %vm720, %v670
  %737 = vst.msk [vmem:[%s7 + $0x80] sm:$0xff] %vm720, %v673
  %738 = vst.msk [vmem:[%s7 + $0x88] sm:$0xff] %vm720, %v676
  %739 = vst.msk [vmem:[%s7 + $0x90] sm:$0xff] %vm720, %v679
  %740 = vst.msk [vmem:[%s7 + $0x98] sm:$0xff] %vm720, %v682
  %741 = vst.msk [vmem:[%s7 + $0xa0] sm:$0xff] %vm720, %v685
  %742 = vst.msk [vmem:[%s7 + $0xa8] sm:$0xff] %vm720, %v688
  %743 = vst.msk [vmem:[%s7 + $0xb0] sm:$0xff] %vm720, %v691
  %744 = vst.msk [vmem:[%s7 + $0xb8] sm:$0xff] %vm720, %v694
  %745 = vst.msk [vmem:[%s7 + $0xc0] sm:$0xff] %vm720, %v697
  %746 = vst.msk [vmem:[%s7 + $0xc8] sm:$0xff] %vm720, %v700
  %747 = vst.msk [vmem:[%s7 + $0xd0] sm:$0xff] %vm720, %v703
  %748 = vst.msk [vmem:[%s7 + $0xd8] sm:$0xff] %vm720, %v706
  %749 = vst.msk [vmem:[%s7 + $0xe0] sm:$0xff] %vm720, %v709
  %750 = vst.msk [vmem:[%s7 + $0xe8] sm:$0xff] %vm720, %v712
  %751 = vst.msk [vmem:[%s7 + $0xf0] sm:$0xff] %vm720, %v715
  %752 = vst.msk [vmem:[%s7 + $0xf8] sm:$0xff] %vm720, %v718
  // Predicated region
  $region30: #{tpu_custom_call.1} parent=0 // pred_check
    _
  $region31: #{tpu_custom_call.1} parent=0 // pred_check_branch
    %754 = sbr.rel (0) target = $region33
  $region32: #{tpu_custom_call.1} parent=0 // pred_region
    _
  $region33: #{tpu_custom_call.1} parent=0 // pred_fallthru
    _
  // Predicated region
  $region34: #{tpu_custom_call.1} parent=0 // pred_check
    _
  $region35: #{tpu_custom_call.1} parent=0 // pred_check_branch
    %756 = sbr.rel (0) target = $region37
  $region36: #{tpu_custom_call.1} parent=0 // pred_region
    _
  $region37: #{tpu_custom_call.1} parent=0 // pred_fallthru
    _

</llo_original>
